<compile_context>
chip_gen: v7x
topology: tpu7x:2x2x1
jax: 0.10.0
libtpu: 0.0.40
codegen_flags: <defaults>
</compile_context>

<pallas_src>
import jax
import jax.numpy as jnp
from jax.experimental import pallas as pl
from jax.experimental.pallas import tpu as pltpu

_LANES = 128
_SUBLANES = 8
_TARGET_BLOCK_BYTES = 4 * 1024 * 1024   # ~4 MiB/block -> ~16 MiB double-buffered in+out
_MIN_BLOCK_BYTES = 256 * 1024           # never shrink blocks below ~256 KiB when splitting
_MIN_GRID_STEPS = 8                     # ~2 steps x 2 buffers x 2 TensorCores (v7x)
_VMEM_LIMIT_BYTES = 32 * 1024 * 1024    # lift v5e's 16 MiB scoped default; = v6e/v7x default


def _log_kernel(x_ref, o_ref):
    # Elementwise natural log on the current VMEM tile (EUP transcendental path).
    o_ref[...] = jnp.log(x_ref[...])


def _choose_cols(n: int):
    """Widest lane-dense (multiple-of-128) column count that divides n."""
    for cols in (4096, 2048, 1024, 512, 256, 128):
        if n % cols == 0:
            return cols
    return None


def _run_log_2d(x2d: jax.Array) -> jax.Array:
    rows, cols = x2d.shape
    itemsize = jnp.dtype(x2d.dtype).itemsize
    # Sublane quantum: 8 for 32-bit, 16 for bf16/fp16, 32 for 8-bit dtypes.
    sub = _SUBLANES * max(1, 4 // itemsize)

    total_bytes = rows * cols * itemsize
    # Number of grid steps: cap blocks at ~4 MiB, and give the pipeline (and
    # v7x's two TensorCores) several steps when the array is big enough that
    # blocks stay >= ~256 KiB.
    desired_steps = max(
        pl.cdiv(total_bytes, _TARGET_BLOCK_BYTES),
        min(_MIN_GRID_STEPS, total_bytes // _MIN_BLOCK_BYTES),
        1,
    )
    block_rows = pl.cdiv(pl.cdiv(rows, desired_steps), sub) * sub
    if block_rows >= rows:
        block_rows = rows  # single full-extent block (legal for any row count)

    grid = (pl.cdiv(rows, block_rows),)  # final block may be partial -> masked

    return pl.pallas_call(
        _log_kernel,
        out_shape=jax.ShapeDtypeStruct((rows, cols), x2d.dtype),
        grid_spec=pltpu.PrefetchScalarGridSpec(
            num_scalar_prefetch=0,
            grid=grid,
            in_specs=[pl.BlockSpec((block_rows, cols), lambda i: (i, 0))],
            out_specs=pl.BlockSpec((block_rows, cols), lambda i: (i, 0)),
        ),
        compiler_params=pltpu.CompilerParams(
            dimension_semantics=("parallel",),
            vmem_limit_bytes=_VMEM_LIMIT_BYTES,
        ),
        cost_estimate=pl.CostEstimate(
            flops=0,
            transcendentals=rows * cols,
            bytes_accessed=2 * total_bytes,
        ),
    )(x2d)


def pallas_log(x: jax.Array) -> jax.Array:
    """Elementwise natural log via a Pallas TPU kernel (any shape / float dtype)."""
    orig_shape = x.shape
    n = x.size
    if n == 0:
        return x

    cols = _choose_cols(n)
    if cols is not None:
        # Fast path: pure reshape to a lane-dense slab — no padding, no slicing.
        return _run_log_2d(x.reshape(n // cols, cols)).reshape(orig_shape)

    # Ragged size (n not a multiple of 128): kernel on the aligned prefix,
    # tiny (<128 elem) tail via plain jnp.log, stitched back together.
    x_flat = x.reshape(-1)
    bulk = (n // _LANES) * _LANES
    if bulk == 0:
        # Fewer than 128 elements: a kernel launch costs more than it saves.
        return jnp.log(x)
    cols_b = _choose_cols(bulk)
    y_bulk = _run_log_2d(x_flat[:bulk].reshape(bulk // cols_b, cols_b)).reshape(-1)
    y_tail = jnp.log(x_flat[bulk:])
    return jnp.concatenate([y_bulk, y_tail]).reshape(orig_shape)


if __name__ == "__main__":
    key = jax.random.PRNGKey(0)
    # Small NCHW-like input, strictly positive so log is well-defined.
    x = jax.random.uniform(
        key, (2, 4, 16, 16), dtype=jnp.float32, minval=0.1, maxval=5.0
    )

    y = pallas_log(x)
    jax.block_until_ready(y)

    # Correctness check against plain JAX reference.
    y_ref = jnp.log(x)
    assert y.shape == x.shape and y.dtype == x.dtype
    assert jnp.allclose(y, y_ref, atol=1e-6, rtol=1e-6)

    # Also exercise a ragged size (not a multiple of 128) to cover the tail path.
    x2 = jax.random.uniform(key, (3, 5, 7), dtype=jnp.float32, minval=0.1, maxval=5.0)
    y2 = pallas_log(x2)
    jax.block_until_ready(y2)
    assert jnp.allclose(y2, jnp.log(x2), atol=1e-6, rtol=1e-6)

    print("KERNEL_OK")
</pallas_src>

<mosaic_0001>
module attributes {stable_mosaic.version = 11 : i64} {
  func.func @_log_kernel(%arg0: i32, %arg1: memref<1x2048xf32, #tpu.memory_space<vmem>>, %arg2: memref<1x2048xf32, #tpu.memory_space<vmem>>) attributes {dimension_semantics = [#tpu.dimension_semantics<parallel>], iteration_bounds = array<i64: 1>, scalar_prefetch = 0 : i64, scratch_operands = 0 : i64, tpu.core_type = #tpu.core_type<tc>, window_params = [{transform_indices = @transform_0, window_bounds = array<i64: 1, 2048>}, {transform_indices = @transform_1, window_bounds = array<i64: 1, 2048>}]} {
    %c0 = arith.constant 0 : index
    %c0_0 = arith.constant 0 : index
    %0 = vector.load %arg1[%c0, %c0_0] : memref<1x2048xf32, #tpu.memory_space<vmem>>, vector<1x2048xf32>
    %1 = math.log %0 : vector<1x2048xf32>
    %c0_1 = arith.constant 0 : index
    %c0_2 = arith.constant 0 : index
    %2 = vector.load %arg2[%c0_1, %c0_2] : memref<1x2048xf32, #tpu.memory_space<vmem>>, vector<1x2048xf32>
    tpu.vector_store %arg2[%c0_1, %c0_2], %1 {strides = array<i32>} : memref<1x2048xf32, #tpu.memory_space<vmem>>, vector<1x2048xf32>,
    return
  }
  func.func @transform_0(%arg0: i32) -> (i32, i32) {
    %c0_i32 = arith.constant 0 : i32
    %c0_i32_0 = arith.constant 0 : i32
    return %arg0, %c0_i32 : i32, i32
  }
  func.func @transform_1(%arg0: i32) -> (i32, i32) {
    %c0_i32 = arith.constant 0 : i32
    %c0_i32_0 = arith.constant 0 : i32
    return %arg0, %c0_i32 : i32, i32
  }
}

</mosaic_0001>

<llo_original>
// kernel: tpu_custom_call.1
$region0: #{tpu_custom_call.1}
  #allocation0 [shape = 'u32[]', space=smem, size = 0x4, offset = 0x4, fixed_abs, tag = 'smem constant byte address 0x4 - core index']
  #allocation1 [shape = 'u32[144,128]{1,0:T(1,128)}', space=vmem, size = 0x12000, scoped, tag = 'internal scratch']
  %s0 = inlined_call_operand.hbm [shape: f32[1,2048], index: 0, kind: input, shape index: {}]
  %s1 = inlined_call_operand.hbm [shape: f32[1,2048], index: 1, kind: output, shape index: {}]
  %s2 = sld [smem:[#allocation0]]
  $region18: #{tpu_custom_call.1} parent=0
    _
  %s4 = ssub.s32 1, %s2
  %s5 = scalar_select 0, %s4, %s2
  $region1: #{tpu_custom_call.1} parent=0
    #allocation2 [shape = 'u8[8192]{0}', space=vmem, size = 0x2000, scoped, tag = 'input window, operand 0, single buffered']
    #allocation3 [shape = 's32[1]{0}', space=sflag, size = 0x4, scoped, tag = 'scoped memory for tpu_custom_call.1']
    #allocation4 [shape = 's32[1]{0}', space=sflag, size = 0x4, scoped, tag = 'scoped memory for tpu_custom_call.1']
    #allocation5 [shape = 'u8[8192]{0}', space=vmem, size = 0x2000, scoped, tag = 'output window, operand 0, single buffered']
    %6 = vsyncpa [#allocation3], 0
    %7 = vsyncpa [#allocation4], 0
    // Predicated region
    $region2: #{tpu_custom_call.1} parent=1 // pred_check
      _
    $region3: #{tpu_custom_call.1} parent=1 // pred_check_branch
      %9 = sbr.rel (0) target = $region5
    $region4: #{tpu_custom_call.1} parent=1 // pred_region
      %s11 = ssub.s32 256, 256
      %12 = vsyncadd [#allocation3], %s11
      %s14 = sshll.u32 [#allocation2], 4
      %s15 = int_to_ptr.vmem [resolvable:$true] %s14
      %17 = dma.hbm_to_vmem [thread:$0]  %s0, 256, %s15, [#allocation3]
    $region5: #{tpu_custom_call.1} parent=1 // pred_fallthru
      _
    // Predicated region
    $region6: #{tpu_custom_call.1} parent=1 // pred_check
      _
    $region7: #{tpu_custom_call.1} parent=1 // pred_check_branch
      %19 = sbr.rel (0) target = $region9
    $region8: #{tpu_custom_call.1} parent=1 // pred_region
      %20 = dma.done [#allocation3], 256
    $region9: #{tpu_custom_call.1} parent=1 // pred_fallthru
      _
    %v21 = vld [vmem:[#allocation2] sm:$0xff]
    %v22 = vld [vmem:[#allocation2 + $0x8] sm:$0xff]
    %v23 = vlog2.pop %v21
    %v24 = vmul.f32 %v23, 0.6931472
    %v25 = vlog2.pop %v22
    %v26 = vmul.f32 %v25, 0.6931472
    %27 = vst [vmem:[#allocation5] sm:$0xff] %v24
    %28 = vst [vmem:[#allocation5 + $0x8] sm:$0xff] %v26
    // Predicated region
    $region10: #{tpu_custom_call.1} parent=1 // pred_check
      _
    $region11: #{tpu_custom_call.1} parent=1 // pred_check_branch
      %30 = sbr.rel (0) target = $region13
    $region12: #{tpu_custom_call.1} parent=1 // pred_region
      %s32 = ssub.s32 256, 256
      %33 = vsyncadd [#allocation4], %s32
      %s35 = sshll.u32 [#allocation5], 4
      %s36 = int_to_ptr.vmem [resolvable:$true] %s35
      %38 = dma.vmem_to_hbm [thread:$0]  %s36, 256, %s1, [#allocation4]
    $region13: #{tpu_custom_call.1} parent=1 // pred_fallthru
      _
    // Predicated region
    $region14: #{tpu_custom_call.1} parent=1 // pred_check
      _
    $region15: #{tpu_custom_call.1} parent=1 // pred_check_branch
      %40 = sbr.rel (0) target = $region17
    $region16: #{tpu_custom_call.1} parent=1 // pred_region
      %41 = dma.done [#allocation4], 256
    $region17: #{tpu_custom_call.1} parent=1 // pred_fallthru
      _
    %42 = vsyncpa [#allocation3], 1
    %43 = vsyncpa [#allocation4], 1

</llo_original>
